<compile_context>
chip_gen: v6e
topology: v6e:2x2x1
jax: 0.10.0
libtpu: 0.0.40
codegen_flags: <defaults>
</compile_context>

<pallas_src>
import functools

import jax
import jax.numpy as jnp
from jax.experimental import pallas as pl
from jax.experimental.pallas import tpu as pltpu


def _bce_partial_sum_kernel(logits_ref, labels_ref, pw_ref, out_ref, *, batch_size):
    """Per-batch-tile partial sum of pos-weighted BCE-with-logits.

    logits_ref: (TB, C) native dtype (bf16/f32) -> upcast to f32 in-register
    labels_ref: (TB, K) int32 class indices (multi-label, count semantics)
    pw_ref:     (1, C)  f32 pos_weight
    out_ref:    (1, 8, 128) f32 -- tile partial sum, broadcast lane-dense
    """
    x = logits_ref[...].astype(jnp.float32)          # upcast in-register, not in HBM
    labels = labels_ref[...]                         # (TB, K) int32
    pw = pw_ref[...].astype(jnp.float32)             # (1, C)

    tb, c = x.shape
    k_per_sample = labels.shape[1]

    # Multi-hot COUNT target: y[b, c] = sum_k [labels[b, k] == c]
    class_ids = jax.lax.broadcasted_iota(jnp.int32, (tb, c), dimension=1)
    y = jnp.zeros((tb, c), dtype=jnp.float32)
    for k in range(k_per_sample):                    # K small & static
        y = y + (class_ids == labels[:, k:k + 1]).astype(jnp.float32)

    # Numerically-stable softplus:
    #   softplus(x)  = max(x,0) + log1p(exp(-|x|));  softplus(-x) = softplus(x) - x
    sp_pos = jnp.maximum(x, 0.0) + jnp.log1p(jnp.exp(-jnp.abs(x)))
    sp_neg = sp_pos - x

    # pw*y*sp_neg + (1-y)*sp_pos, rewritten FMA-shaped (single pw broadcast)
    loss_elem = sp_pos + y * (pw * sp_neg - sp_pos)

    # Zero out rows introduced by batch padding.
    row_ids = pl.program_id(0) * tb + jax.lax.broadcasted_iota(
        jnp.int32, (tb, 1), dimension=0)
    loss_elem = jnp.where(row_ids < batch_size, loss_elem, 0.0)

    out_ref[...] = jnp.full(out_ref.shape, jnp.sum(loss_elem), dtype=jnp.float32)


def _choose_tile_b(batch, n_classes):
    """Batch tile size: big enough to amortize per-step overhead, small enough
    that the f32 working set (a few (TB,C) temps + double-buffered input) stays
    comfortably under the default scoped VMEM limit (32 MiB on v6e/v7x)."""
    tb = min(batch, 512)
    if tb < batch:
        tb = max(8, (tb // 8) * 8)
        while tb > 8 and tb * n_classes * 4 > (4 << 20):   # ~4 MiB per f32 temp
            tb //= 2
    return tb


def bert_classifier_bce_loss(model_output, labels, pos_weights, *, tile_b=None):
    """mean(BCEWithLogitsLoss(pos_weight)(model_output, multi_hot(labels))).

    model_output: (B, C) logits in native dtype (bf16 or f32) -- NOT pre-cast
    labels:       (B, K) integer class indices per sample
    pos_weights:  (C,)   per-class positive weights
    """
    B, C = model_output.shape
    K = labels.shape[1]

    tb = tile_b if tile_b is not None else _choose_tile_b(B, C)
    num_tiles = (B + tb - 1) // tb
    b_pad = num_tiles * tb

    if b_pad != B:
        model_output = jnp.pad(model_output, ((0, b_pad - B), (0, 0)))
        labels = jnp.pad(labels, ((0, b_pad - B), (0, 0)))

    labels = labels.astype(jnp.int32)
    pw2d = pos_weights.reshape(1, C).astype(jnp.float32)

    kernel = functools.partial(_bce_partial_sum_kernel, batch_size=B)

    itemsize = jnp.dtype(model_output.dtype).itemsize
    cost = pl.CostEstimate(
        flops=10 * B * C,
        transcendentals=2 * B * C,
        bytes_accessed=B * C * itemsize + B * K * 4 + C * 4
        + num_tiles * 8 * 128 * 4,
    )

    partials = pl.pallas_call(
        kernel,
        out_shape=jax.ShapeDtypeStruct((num_tiles, 8, 128), jnp.float32),
        grid=(num_tiles,),
        in_specs=[
            pl.BlockSpec((tb, C), lambda i: (i, 0)),   # logits tile (native dtype)
            pl.BlockSpec((tb, K), lambda i: (i, 0)),   # label indices tile
            pl.BlockSpec((1, C), lambda i: (0, 0)),    # pos_weight (resident)
        ],
        out_specs=pl.BlockSpec((1, 8, 128), lambda i: (i, 0, 0)),
        compiler_params=pltpu.CompilerParams(
            dimension_semantics=("parallel",)),        # shardable across v7x's 2 TCs
        cost_estimate=cost,
    )(model_output, labels, pw2d)

    # One scalar per tile (replicated over its 8x128 block) -> finish mean in XLA.
    return jnp.sum(partials[:, 0, 0]) / (B * C)


def _reference_loss(model_output, labels, pos_weights):
    """Pure-JAX reference mirroring torch BCEWithLogitsLoss(pos_weight=...)."""
    C = model_output.shape[1]
    x = model_output.astype(jnp.float32)
    y = jax.nn.one_hot(labels, C, dtype=jnp.float32).sum(axis=1)   # (B, C) counts
    pw = pos_weights.reshape(1, C).astype(jnp.float32)
    sp_pos = jnp.maximum(x, 0.0) + jnp.log1p(jnp.exp(-jnp.abs(x)))
    sp_neg = sp_pos - x
    return jnp.mean(pw * y * sp_neg + (1.0 - y) * sp_pos)


if __name__ == "__main__":
    key = jax.random.PRNGKey(0)

    # --- case 1: tiny single-tile (module-scale toy shapes), bf16 logits ---
    k1, k2, k3, k4, k5, k6 = jax.random.split(key, 6)
    B, C, K = 4, 8, 2
    logits = jax.random.normal(k1, (B, C), dtype=jnp.float32).astype(jnp.bfloat16)
    labels = jax.random.randint(k2, (B, K), minval=0, maxval=C, dtype=jnp.int32)
    pos_w = 0.5 + jax.random.uniform(k3, (C,), dtype=jnp.float32)

    loss = bert_classifier_bce_loss(logits, labels, pos_w)
    jax.block_until_ready(loss)
    ref = _reference_loss(logits, labels, pos_w)
    assert jnp.allclose(loss, ref, rtol=1e-4, atol=1e-5), (loss, ref)

    # --- case 2: multi-tile path with batch padding (forced small tile) ---
    B2, C2, K2 = 20, 16, 3
    logits2 = jax.random.normal(k4, (B2, C2), dtype=jnp.float32).astype(jnp.bfloat16)
    labels2 = jax.random.randint(k5, (B2, K2), minval=0, maxval=C2, dtype=jnp.int32)
    pos_w2 = 0.5 + jax.random.uniform(k6, (C2,), dtype=jnp.float32)

    loss2 = bert_classifier_bce_loss(logits2, labels2, pos_w2, tile_b=8)
    jax.block_until_ready(loss2)
    ref2 = _reference_loss(logits2, labels2, pos_w2)
    assert jnp.allclose(loss2, ref2, rtol=1e-4, atol=1e-5), (loss2, ref2)

    print("KERNEL_OK")
</pallas_src>

<mosaic_0001>
module attributes {stable_mosaic.version = 11 : i64} {
  func.func @_bce_partial_sum_kernel(%arg0: i32, %arg1: memref<4x8xbf16, #tpu.memory_space<vmem>>, %arg2: memref<4x2xi32, #tpu.memory_space<vmem>>, %arg3: memref<1x8xf32, #tpu.memory_space<vmem>>, %arg4: memref<1x8x128xf32, #tpu.memory_space<vmem>>) attributes {dimension_semantics = [#tpu.dimension_semantics<parallel>], iteration_bounds = array<i64: 1>, scalar_prefetch = 0 : i64, scratch_operands = 0 : i64, tpu.core_type = #tpu.core_type<tc>, window_params = [{transform_indices = @transform_0, window_bounds = array<i64: 4, 8>}, {transform_indices = @transform_1, window_bounds = array<i64: 4, 2>}, {pipeline_mode = #tpu.pipeline_mode<synchronous>, transform_indices = @transform_2, window_bounds = array<i64: 1, 8>}, {transform_indices = @transform_3, window_bounds = array<i64: 1, 8, 128>}]} {
    %c0 = arith.constant 0 : index
    %c0_0 = arith.constant 0 : index
    %0 = vector.load %arg1[%c0, %c0_0] : memref<4x8xbf16, #tpu.memory_space<vmem>>, vector<4x8xbf16>
    %1 = arith.extf %0 : vector<4x8xbf16> to vector<4x8xf32>
    %c0_1 = arith.constant 0 : index
    %c0_2 = arith.constant 0 : index
    %2 = vector.load %arg2[%c0_1, %c0_2] : memref<4x2xi32, #tpu.memory_space<vmem>>, vector<4x2xi32>
    %c0_3 = arith.constant 0 : index
    %c0_4 = arith.constant 0 : index
    %3 = vector.load %arg3[%c0_3, %c0_4] : memref<1x8xf32, #tpu.memory_space<vmem>>, vector<1x8xf32>
    %4 = tpu.iota {dimensions = array<i32: 1>} : vector<4x8xi32>
    %cst = arith.constant 0.000000e+00 : f32
    %5 = vector.broadcast %cst : f32 to vector<4x8xf32>
    %6 = vector.extract_strided_slice %2 {offsets = [0, 0], sizes = [4, 1], strides = [1, 1]} : vector<4x2xi32> to vector<4x1xi32>
    %7 = vector.broadcast %6 : vector<4x1xi32> to vector<4x8xi32>
    %8 = arith.cmpi eq, %4, %7 : vector<4x8xi32>
    %9 = arith.extui %8 : vector<4x8xi1> to vector<4x8xi32>
    %10 = arith.sitofp %9 : vector<4x8xi32> to vector<4x8xf32>
    %11 = arith.addf %5, %10 : vector<4x8xf32>
    %12 = vector.extract_strided_slice %2 {offsets = [0, 1], sizes = [4, 1], strides = [1, 1]} : vector<4x2xi32> to vector<4x1xi32>
    %13 = vector.broadcast %12 : vector<4x1xi32> to vector<4x8xi32>
    %14 = arith.cmpi eq, %4, %13 : vector<4x8xi32>
    %15 = arith.extui %14 : vector<4x8xi1> to vector<4x8xi32>
    %16 = arith.sitofp %15 : vector<4x8xi32> to vector<4x8xf32>
    %17 = arith.addf %11, %16 : vector<4x8xf32>
    %cst_5 = arith.constant 0.000000e+00 : f32
    %18 = vector.broadcast %cst_5 : f32 to vector<4x8xf32>
    %19 = arith.maximumf %1, %18 : vector<4x8xf32>
    %20 = math.absf %1 : vector<4x8xf32>
    %cst_6 = arith.constant 0.000000e+00 : f32
    %21 = vector.broadcast %cst_6 : f32 to vector<4x8xf32>
    %22 = arith.subf %21, %20 : vector<4x8xf32>
    %23 = math.exp %22 : vector<4x8xf32>
    %24 = math.log1p %23 : vector<4x8xf32>
    %25 = arith.addf %19, %24 : vector<4x8xf32>
    %26 = arith.subf %25, %1 : vector<4x8xf32>
    %27 = vector.broadcast %3 : vector<1x8xf32> to vector<4x8xf32>
    %28 = arith.mulf %27, %26 : vector<4x8xf32>
    %29 = arith.subf %28, %25 : vector<4x8xf32>
    %30 = arith.mulf %17, %29 : vector<4x8xf32>
    %31 = arith.addf %25, %30 : vector<4x8xf32>
    %c4_i32 = arith.constant 4 : i32
    %32 = arith.muli %arg0, %c4_i32 : i32
    %33 = tpu.iota {dimensions = array<i32: 0>} : vector<4x1xi32>
    %34 = vector.broadcast %32 : i32 to vector<4x1xi32>
    %35 = arith.addi %34, %33 : vector<4x1xi32>
    %c4_i32_7 = arith.constant 4 : i32
    %36 = vector.broadcast %c4_i32_7 : i32 to vector<4x1xi32>
    %37 = arith.cmpi slt, %35, %36 : vector<4x1xi32>
    %cst_8 = arith.constant 0.000000e+00 : f32
    %38 = vector.shape_cast %37 : vector<4x1xi1> to vector<4x1xi1>
    %39 = vector.broadcast %38 : vector<4x1xi1> to vector<4x8xi1>
    %40 = vector.broadcast %cst_8 : f32 to vector<4x8xf32>
    %41 = arith.select %39, %31, %40 : vector<4x8xi1>, vector<4x8xf32>
    %42 = vector.shape_cast %41 : vector<4x8xf32> to vector<1x4x8xf32>
    %cst_9 = arith.constant dense<0.000000e+00> : vector<1xf32>
    %43 = vector.multi_reduction <add>, %42, %cst_9 [1, 2] : vector<1x4x8xf32> to vector<1xf32>
    %44 = vector.shape_cast %43 : vector<1xf32> to vector<1x1x1xf32>
    %45 = vector.extract %44[0, 0, 0] : f32 from vector<1x1x1xf32>
    %46 = vector.broadcast %45 : f32 to vector<1x8x128xf32>
    %c0_10 = arith.constant 0 : index
    %c0_11 = arith.constant 0 : index
    %c0_12 = arith.constant 0 : index
    %47 = vector.load %arg4[%c0_10, %c0_11, %c0_12] : memref<1x8x128xf32, #tpu.memory_space<vmem>>, vector<1x8x128xf32>
    tpu.vector_store %arg4[%c0_10, %c0_11, %c0_12], %46 {strides = array<i32>} : memref<1x8x128xf32, #tpu.memory_space<vmem>>, vector<1x8x128xf32>,
    return
  }
  func.func @transform_0(%arg0: i32) -> (i32, i32) {
    %c0_i32 = arith.constant 0 : i32
    %c0_i32_0 = arith.constant 0 : i32
    return %arg0, %c0_i32 : i32, i32
  }
  func.func @transform_1(%arg0: i32) -> (i32, i32) {
    %c0_i32 = arith.constant 0 : i32
    %c0_i32_0 = arith.constant 0 : i32
    return %arg0, %c0_i32 : i32, i32
  }
  func.func @transform_2(%arg0: i32) -> (i32, i32) {
    %c0_i32 = arith.constant 0 : i32
    %c0_i32_0 = arith.constant 0 : i32
    %c0_i32_1 = arith.constant 0 : i32
    return %c0_i32, %c0_i32_0 : i32, i32
  }
  func.func @transform_3(%arg0: i32) -> (i32, i32, i32) {
    %c0_i32 = arith.constant 0 : i32
    %c0_i32_0 = arith.constant 0 : i32
    %c0_i32_1 = arith.constant 0 : i32
    return %arg0, %c0_i32, %c0_i32_0 : i32, i32, i32
  }
}

</mosaic_0001>

<llo_original>
// kernel: tpu_custom_call.1
$region0: #{tpu_custom_call.1}
  #allocation0 [shape = 'u32[]', space=smem, size = 0x4, offset = 0x4, fixed_abs, tag = 'smem constant byte address 0x4 - core index']
  #allocation1 [shape = 'u32[144,128]{1,0:T(1,128)}', space=vmem, size = 0x12000, scoped, tag = 'internal scratch']
  %s0 = inlined_call_operand.vmem [shape: bf16[4,8], index: 0, kind: input, shape index: {}]
  %s1 = inlined_call_operand.vmem [shape: s32[4,2], index: 1, kind: input, shape index: {}]
  %s2 = inlined_call_operand.vmem [shape: f32[1,8], index: 2, kind: input, shape index: {}]
  %s3 = inlined_call_operand.hbm [shape: f32[1,8,128], index: 3, kind: output, shape index: {}]
  %s4 = sld [smem:[#allocation0]]
  $region22: #{tpu_custom_call.1} parent=0
    _
  %s6 = ssub.s32 1, %s4
  %s7 = scalar_select 0, %s6, %s4
  $region1: #{tpu_custom_call.1} parent=0
    #allocation2 [shape = 'u8[4096]{0}', space=vmem, size = 0x1000, scoped, tag = 'output window, operand 0, single buffered']
    #allocation3 [shape = 's32[1]{0}', space=sflag, size = 0x4, scoped, tag = 'scoped memory for tpu_custom_call.1']
    %8 = vsyncpa [#allocation3], 0
    // Predicated region
    $region2: #{tpu_custom_call.1} parent=1 // pred_check
      _
    $region3: #{tpu_custom_call.1} parent=1 // pred_check_branch
      %10 = sbr.rel (0) target = $region5
    $region4: #{tpu_custom_call.1} parent=1 // pred_region
      _
    $region5: #{tpu_custom_call.1} parent=1 // pred_fallthru
      _
    // Predicated region
    $region6: #{tpu_custom_call.1} parent=1 // pred_check
      _
    $region7: #{tpu_custom_call.1} parent=1 // pred_check_branch
      %12 = sbr.rel (0) target = $region9
    $region8: #{tpu_custom_call.1} parent=1 // pred_region
      _
    $region9: #{tpu_custom_call.1} parent=1 // pred_fallthru
      _
    // Predicated region
    $region10: #{tpu_custom_call.1} parent=1 // pred_check
      _
    $region11: #{tpu_custom_call.1} parent=1 // pred_check_branch
      %14 = sbr.rel (0) target = $region13
    $region12: #{tpu_custom_call.1} parent=1 // pred_region
      _
    $region13: #{tpu_custom_call.1} parent=1 // pred_fallthru
      _
    %v15 = vld [vmem:[%s0] sm:$0x3]
    %v16 = vunpack.c.l.bf16 %v15
    %v17 = vld [vmem:[%s1] sm:$0xf]
    %v18 = vld [vmem:[%s2] sm:$0x1]
    %v19 = vlaneseq
    %v20 = vand.u32 %v19, 127
    %21 = vset.pattern.permute.xlu0 0
    %22 = vperm.xlu0 %21, %v17
    %v23 = vpop.permute.xlu0 %22
    %vm24 = vcmp.eq.s32.totalorder %v20, %v23
    %v25 = vsel %vm24, 1, 0
    %v26 = vcvt.s32.f32 %v25
    %v27 = vadd.f32 %v26, 0.0
    %28 = vset.pattern.permute.xlu0 1
    %29 = vperm.xlu0 %28, %v17
    %v30 = vpop.permute.xlu0 %29
    %vm31 = vcmp.eq.s32.totalorder %v20, %v30
    %v32 = vsel %vm31, 1, 0
    %v33 = vcvt.s32.f32 %v32
    %v34 = vadd.f32 %v27, %v33
    %v35 = vmax.f32 %v16, 0.0
    %v36 = vand.u32 2147483647, %v16
    %v37 = vsub.f32 0.0, %v36
    %v38 = vmul.f32 %v37, 1.442695
    %v39 = vpow.pop %v38
    %v40 = vadd.f32 %v39, 1.0
    %v41 = vlog2.pop %v40
    %v42 = vmul.f32 %v41, 0.6931472
    %v43 = vmul.f32 -0.5, %v39
    %v44 = vadd.f32 %v43, 1.0
    %v45 = vmul.f32 %v44, %v39
    %v46 = vand.u32 2147483647, %v39
    %vm47 = vcmp.lt.f32.partialorder %v46, 0.0004427343
    %v48 = vsel %vm47, %v45, %v42
    %v49 = vadd.f32 %v35, %v48
    %v50 = vsub.f32 %v49, %v16
    %v52 = vlaneseq
    %v53 = vshrl.u32 %v52, 7
    %v54 = vsub.s32 0, %v53
    %v55 = vrot.slane %v18, %v54
    %v57 = vmul.f32 %v55, %v50
    %v58 = vsub.f32 %v57, %v49
    %v59 = vmul.f32 %v34, %v58
    %v60 = vadd.f32 %v49, %v59
    %s61 = smul.u32 0, 4
    %v62 = vlaneseq
    %v63 = vshrl.u32 %v62, 7
    %v64 = vstv %s61
    %v65 = vadd.s32 %v64, %v63
    %vm66 = vcmp.lt.s32.totalorder %v65, 4
    %v67 = vsel %vm66, 1, 0
    %vm68 = vcmp.eq.s32.totalorder %v67, 1
    %v69 = vsel %vm68, %v60, 0.0
    %vm70 = vcmask 60416
    %v71 = vsel %vm70, %v69, 0.0
    %72 = vadd.xlane.f32.xlu0 %v71
    %v73 = vpop.xlane.xlu0 %72
    %v74 = vrot.slane %v73, 4
    %v75 = vadd.f32 %v73, %v74
    %v76 = vrot.slane %v75, 2
    %v77 = vadd.f32 %v75, %v76
    %v78 = vrot.slane %v77, 1
    %v79 = vadd.f32 %v77, %v78
    %s80 = vtos %v79
    %v81 = vstv %s80
    %82 = vst [vmem:[#allocation2] sm:$0xff] %v81
    // Predicated region
    $region14: #{tpu_custom_call.1} parent=1 // pred_check
      _
    $region15: #{tpu_custom_call.1} parent=1 // pred_check_branch
      %84 = sbr.rel (0) target = $region17
    $region16: #{tpu_custom_call.1} parent=1 // pred_region
      %s86 = ssub.s32 128, 128
      %87 = vsyncadd [#allocation3], %s86
      %s89 = sshll.u32 [#allocation2], 4
      %s90 = int_to_ptr.vmem [resolvable:$true] %s89
      %92 = dma.vmem_to_hbm [thread:$0]  %s90, 128, %s3, [#allocation3]
    $region17: #{tpu_custom_call.1} parent=1 // pred_fallthru
      _
    // Predicated region
    $region18: #{tpu_custom_call.1} parent=1 // pred_check
      _
    $region19: #{tpu_custom_call.1} parent=1 // pred_check_branch
      %94 = sbr.rel (0) target = $region21
    $region20: #{tpu_custom_call.1} parent=1 // pred_region
      %95 = dma.done [#allocation3], 128
    $region21: #{tpu_custom_call.1} parent=1 // pred_fallthru
      _
    %96 = vsyncpa [#allocation3], 1

</llo_original>
